<compile_context>
chip_gen: v7x
topology: tpu7x:2x2x1
jax: 0.10.0
libtpu: 0.0.40
codegen_flags: <defaults>
</compile_context>

<pallas_src>
import jax
import jax.numpy as jnp
from jax.experimental import pallas as pl
from jax.experimental.pallas import tpu as pltpu


def _make_gather_sigmoid_kernel(n, block_n):
    """Builds the kernel body; `n` and `block_n` are static Python ints."""

    def kernel(cls_ref, x_hbm, o_ref, buf, sem):
        # cls_ref : SMEM (n,) int32            -- scalar-prefetched predicted classes
        # x_hbm   : HBM  (n, C, HW)            -- raw mask logits (memory_space=ANY)
        # o_ref   : VMEM (block_n, HW) output  -- sigmoid probabilities for this block
        # buf     : VMEM (2, block_n, HW)      -- double-buffered gather slab
        # sem     : DMA semaphores (2, block_n)
        g = pl.program_id(0)
        ng = pl.num_programs(0)
        slot = g % 2

        def issue(step, slot_idx):
            base = step * block_n
            for b in range(block_n):  # static unroll
                # Clamp tail rows to n-1 so the data-dependent DMA never goes OOB;
                # duplicate tail gathers land in padded output rows that are sliced off.
                row = jnp.minimum(base + b, n - 1)
                cls = cls_ref[row]
                pltpu.make_async_copy(
                    x_hbm.at[row, pl.ds(cls, 1), :],   # (1, HW) class channel of instance
                    buf.at[slot_idx, pl.ds(b, 1), :],  # (1, HW) row of the VMEM slab
                    sem.at[slot_idx, b],
                ).start()

        # Prime the pipeline with this (first) step's gathers.
        @pl.when(g == 0)
        def _():
            issue(0, 0)

        # Prefetch the next step's gathers into the other slot BEFORE blocking on the
        # current slot (also keeps the SMEM scalar reads ahead of the DMA waits).
        @pl.when(g + 1 < ng)
        def _():
            issue(g + 1, 1 - slot)

        # Wait for the current step's gathers (shape-only src ref, matching sizes).
        for b in range(block_n):
            pltpu.make_async_copy(
                x_hbm.at[0, pl.ds(0, 1), :],
                buf.at[slot, pl.ds(b, 1), :],
                sem.at[slot, b],
            ).wait()

        # Vectorized sigmoid over the whole (block_n, HW) slab.  exp runs on the EUP
        # slot; exact reciprocal is kept (approx=True would relax numerical accuracy
        # for no measurable gain on this latency-bound kernel).
        xv = buf[slot].astype(jnp.float32)
        o_ref[...] = (1.0 / (1.0 + jnp.exp(-xv))).astype(o_ref.dtype)

    return kernel


def mask_rcnn_inference_pallas(pred_mask_logits, class_pred, *, block_n=32):
    """pred_mask_logits: (N, C, H, W); class_pred: (N,) int32 -> (N, 1, H, W) sigmoid probs."""
    n, c, h, w = pred_mask_logits.shape
    hw = h * w
    dtype = pred_mask_logits.dtype

    if n == 0:
        return jnp.zeros((0, 1, h, w), dtype=dtype)

    if c == 1:
        # class-agnostic masks: every instance uses channel 0
        class_pred = jnp.zeros((n,), dtype=jnp.int32)
    # Clamp so the data-dependent DMA channel offset can never be out of bounds.
    class_pred = jnp.clip(class_pred.astype(jnp.int32), 0, c - 1)

    # Lane-dense layout: flatten spatial dims onto the lane axis (free reshape,
    # no HBM copy -- collapsing trailing dims is layout preserving).
    x = pred_mask_logits.reshape(n, c, hw)

    # Instances per grid step: multiple of 8 (sublanes), shrunk for tiny N.
    block_n = max(8, min(block_n, pl.cdiv(n, 8) * 8))
    assert block_n % 8 == 0
    num_blocks = pl.cdiv(n, block_n)
    n_pad = num_blocks * block_n

    itemsize = jnp.dtype(dtype).itemsize
    cost = pl.CostEstimate(
        flops=4 * n * hw,
        transcendentals=n * hw,
        bytes_accessed=2 * n * hw * itemsize + 4 * n,
    )

    kernel = _make_gather_sigmoid_kernel(n, block_n)

    out_flat = pl.pallas_call(
        kernel,
        out_shape=jax.ShapeDtypeStruct((n_pad, hw), dtype),
        grid_spec=pltpu.PrefetchScalarGridSpec(
            num_scalar_prefetch=1,
            grid=(num_blocks,),
            in_specs=[pl.BlockSpec(memory_space=pl.ANY)],       # logits stay in HBM
            out_specs=pl.BlockSpec((block_n, hw), lambda g, cls: (g, 0)),
            scratch_shapes=[
                pltpu.VMEM((2, block_n, hw), dtype),             # double-buffered gather slab
                pltpu.SemaphoreType.DMA((2, block_n)),
            ],
        ),
        compiler_params=pltpu.CompilerParams(
            # Cross-step double-buffer scratch state -> the grid axis must be
            # sequential ("arbitrary"), not "parallel".
            dimension_semantics=("arbitrary",),
        ),
        cost_estimate=cost,
    )(class_pred, x)

    # Drop padded rows; pad columns never exist (HW kept at full width).
    return out_flat[:n].reshape(n, 1, h, w)


class BaseMaskRCNNHead:
    """JAX/Pallas port of detectron2 BaseMaskRCNNHead (inference path)."""

    def __init__(self, *, vis_period=0):
        self.vis_period = vis_period
        self.training = False

    def layers(self, x):
        # Abstract in the PyTorch base class (raises NotImplementedError); the conv/deconv
        # tower lives in subclasses such as MaskRCNNConvUpsampleHead.
        # TODO(synk): base class has no `layers` implementation -- identity passthrough here.
        return x

    def forward(self, x, instances):
        x = self.layers(x)
        if self.training:
            # TODO(synk): mask_rcnn_loss is an empty `pass` in the reference (returns None).
            return {"loss_mask": None}
        else:
            self._mask_rcnn_inference(x, instances)
            return instances

    # mirrors mask_rcnn_inference(pred_mask_logits, pred_instances)
    def _mask_rcnn_inference(self, pred_mask_logits, pred_instances):
        cls_agnostic_mask = pred_mask_logits.shape[1] == 1
        if cls_agnostic_mask:
            class_pred = jnp.zeros((pred_mask_logits.shape[0],), dtype=jnp.int32)
        else:
            class_pred = jnp.concatenate(
                [inst["pred_classes"] for inst in pred_instances]
            ).astype(jnp.int32)

        mask_probs_pred = mask_rcnn_inference_pallas(pred_mask_logits, class_pred)

        # split back per image and attach as pred_masks
        num_boxes_per_image = [int(inst["pred_classes"].shape[0]) for inst in pred_instances]
        offsets = [0]
        for nb in num_boxes_per_image:
            offsets.append(offsets[-1] + nb)
        for k, inst in enumerate(pred_instances):
            inst["pred_masks"] = mask_probs_pred[offsets[k]:offsets[k + 1]]


if __name__ == "__main__":
    key = jax.random.PRNGKey(0)
    k_x, _ = jax.random.split(key)

    # 2 images, 2 instances each -> N=4 total instances; 4 classes; 16x16 mask logits.
    N, C, H, W = 4, 4, 16, 16
    pred_mask_logits = jax.random.normal(k_x, (N, C, H, W), dtype=jnp.float32)

    pred_instances = [
        {"pred_classes": jnp.array([1, 3], dtype=jnp.int32)},
        {"pred_classes": jnp.array([0, 2], dtype=jnp.int32)},
    ]

    head = BaseMaskRCNNHead(vis_period=0)
    head.training = False
    out_instances = head.forward(pred_mask_logits, pred_instances)

    # block on results
    masks = [jax.block_until_ready(inst["pred_masks"]) for inst in out_instances]

    # pure-JAX reference check of the gather + sigmoid
    class_pred = jnp.concatenate([i["pred_classes"] for i in pred_instances])
    ref = jax.nn.sigmoid(
        pred_mask_logits[jnp.arange(N), class_pred][:, None, :, :]
    )
    got = jnp.concatenate(masks, axis=0)
    assert got.shape == (N, 1, H, W), got.shape
    assert jnp.allclose(got, ref, atol=1e-5, rtol=1e-5), "mismatch vs reference"

    print("KERNEL_OK")
</pallas_src>

<mosaic_0001>
module attributes {stable_mosaic.version = 11 : i64} {
  func.func @kernel(%arg0: i32, %arg1: memref<4xi32, #tpu.memory_space<smem>>, %arg2: memref<4x4x256xf32, #tpu.memory_space<any>>, %arg3: memref<8x256xf32, #tpu.memory_space<vmem>>, %arg4: memref<2x8x256xf32, #tpu.memory_space<vmem>>, %arg5: memref<2x8x!tpu.dma_semaphore, #tpu.memory_space<semaphore_mem>>) attributes {dimension_semantics = [#tpu.dimension_semantics<arbitrary>], iteration_bounds = array<i64: 1>, scalar_prefetch = 1 : i64, scratch_operands = 2 : i64, tpu.core_type = #tpu.core_type<tc>, window_params = [{}, {transform_indices = @transform_1, window_bounds = array<i64: 8, 256>}]} {
    %c2_i32 = arith.constant 2 : i32
    %c0_i32 = arith.constant 0 : i32
    %0 = arith.cmpi eq, %c2_i32, %c0_i32 : i32
    %c1_i32 = arith.constant 1 : i32
    %1 = arith.select %0, %c1_i32, %c2_i32 : i32
    %2 = arith.remsi %arg0, %1 : i32
    %c0_i32_0 = arith.constant 0 : i32
    %3 = arith.cmpi ne, %2, %c0_i32_0 : i32
    %c0_i32_1 = arith.constant 0 : i32
    %4 = arith.cmpi slt, %2, %c0_i32_1 : i32
    %c0_i32_2 = arith.constant 0 : i32
    %5 = arith.cmpi slt, %1, %c0_i32_2 : i32
    %6 = arith.xori %4, %5 : i1
    %7 = arith.andi %6, %3 : i1
    %8 = arith.addi %2, %1 : i32
    %9 = arith.select %7, %8, %2 : i32
    %c0_i32_3 = arith.constant 0 : i32
    %10 = arith.cmpi eq, %arg0, %c0_i32_3 : i32
    %11 = arith.extui %10 : i1 to i32
    %c0_i32_4 = arith.constant 0 : i32
    %12 = arith.cmpi ne, %11, %c0_i32_4 : i32
    scf.if %12 {
      %c0_i32_56 = arith.constant 0 : i32
      %c3_i32_57 = arith.constant 3 : i32
      %76 = arith.minsi %c0_i32_56, %c3_i32_57 : i32
      %77 = arith.index_cast %76 : i32 to index
      %78 = memref.load %arg1[%77] : memref<4xi32, #tpu.memory_space<smem>>
      %c0_i32_58 = arith.constant 0 : i32
      %c0_i32_59 = arith.constant 0 : i32
      %c0_i32_60 = arith.constant 0 : i32
      %c0_i32_61 = arith.constant 0 : i32
      %79 = tpu.memref_slice %arg2[%76, %78, %c0_i32_61] : memref<4x4x256xf32, #tpu.memory_space<any>> -> memref<1x1x256xf32, #tpu.memory_space<any>>
      %80 = tpu.memref_squeeze %79 : memref<1x1x256xf32, #tpu.memory_space<any>> -> memref<1x256xf32, #tpu.memory_space<any>>
      %c0_i32_62 = arith.constant 0 : i32
      %c0_i32_63 = arith.constant 0 : i32
      %81 = tpu.memref_slice %arg4[%c0_i32_58, %c0_i32_62, %c0_i32_63] : memref<2x8x256xf32, #tpu.memory_space<vmem>> -> memref<1x1x256xf32, #tpu.memory_space<vmem>>
      %82 = tpu.memref_squeeze %81 : memref<1x1x256xf32, #tpu.memory_space<vmem>> -> memref<1x256xf32, #tpu.memory_space<vmem>>
      %83 = tpu.memref_slice %arg5[%c0_i32_59, %c0_i32_60] : memref<2x8x!tpu.dma_semaphore, #tpu.memory_space<semaphore_mem>> -> memref<1x1x!tpu.dma_semaphore, #tpu.memory_space<semaphore_mem>>
      %84 = tpu.memref_squeeze %83 : memref<1x1x!tpu.dma_semaphore, #tpu.memory_space<semaphore_mem>> -> memref<!tpu.dma_semaphore, #tpu.memory_space<semaphore_mem>>
      tpu.enqueue_dma source(%80 : memref<1x256xf32, #tpu.memory_space<any>>) target(%82 : memref<1x256xf32, #tpu.memory_space<vmem>>) target_semaphore(%84 : memref<!tpu.dma_semaphore, #tpu.memory_space<semaphore_mem>>)
      %c1_i32_64 = arith.constant 1 : i32
      %c3_i32_65 = arith.constant 3 : i32
      %85 = arith.minsi %c1_i32_64, %c3_i32_65 : i32
      %86 = arith.index_cast %85 : i32 to index
      %87 = memref.load %arg1[%86] : memref<4xi32, #tpu.memory_space<smem>>
      %c0_i32_66 = arith.constant 0 : i32
      %c0_i32_67 = arith.constant 0 : i32
      %c1_i32_68 = arith.constant 1 : i32
      %c0_i32_69 = arith.constant 0 : i32
      %88 = tpu.memref_slice %arg2[%85, %87, %c0_i32_69] : memref<4x4x256xf32, #tpu.memory_space<any>> -> memref<1x1x256xf32, #tpu.memory_space<any>>
      %89 = tpu.memref_squeeze %88 : memref<1x1x256xf32, #tpu.memory_space<any>> -> memref<1x256xf32, #tpu.memory_space<any>>
      %c1_i32_70 = arith.constant 1 : i32
      %c0_i32_71 = arith.constant 0 : i32
      %90 = tpu.memref_slice %arg4[%c0_i32_66, %c1_i32_70, %c0_i32_71] : memref<2x8x256xf32, #tpu.memory_space<vmem>> -> memref<1x1x256xf32, #tpu.memory_space<vmem>>
      %91 = tpu.memref_squeeze %90 : memref<1x1x256xf32, #tpu.memory_space<vmem>> -> memref<1x256xf32, #tpu.memory_space<vmem>>
      %92 = tpu.memref_slice %arg5[%c0_i32_67, %c1_i32_68] : memref<2x8x!tpu.dma_semaphore, #tpu.memory_space<semaphore_mem>> -> memref<1x1x!tpu.dma_semaphore, #tpu.memory_space<semaphore_mem>>
      %93 = tpu.memref_squeeze %92 : memref<1x1x!tpu.dma_semaphore, #tpu.memory_space<semaphore_mem>> -> memref<!tpu.dma_semaphore, #tpu.memory_space<semaphore_mem>>
      tpu.enqueue_dma source(%89 : memref<1x256xf32, #tpu.memory_space<any>>) target(%91 : memref<1x256xf32, #tpu.memory_space<vmem>>) target_semaphore(%93 : memref<!tpu.dma_semaphore, #tpu.memory_space<semaphore_mem>>)
      %c2_i32_72 = arith.constant 2 : i32
      %c3_i32_73 = arith.constant 3 : i32
      %94 = arith.minsi %c2_i32_72, %c3_i32_73 : i32
      %95 = arith.index_cast %94 : i32 to index
      %96 = memref.load %arg1[%95] : memref<4xi32, #tpu.memory_space<smem>>
      %c0_i32_74 = arith.constant 0 : i32
      %c0_i32_75 = arith.constant 0 : i32
      %c2_i32_76 = arith.constant 2 : i32
      %c0_i32_77 = arith.constant 0 : i32
      %97 = tpu.memref_slice %arg2[%94, %96, %c0_i32_77] : memref<4x4x256xf32, #tpu.memory_space<any>> -> memref<1x1x256xf32, #tpu.memory_space<any>>
      %98 = tpu.memref_squeeze %97 : memref<1x1x256xf32, #tpu.memory_space<any>> -> memref<1x256xf32, #tpu.memory_space<any>>
      %c2_i32_78 = arith.constant 2 : i32
      %c0_i32_79 = arith.constant 0 : i32
      %99 = tpu.memref_slice %arg4[%c0_i32_74, %c2_i32_78, %c0_i32_79] : memref<2x8x256xf32, #tpu.memory_space<vmem>> -> memref<1x1x256xf32, #tpu.memory_space<vmem>>
      %100 = tpu.memref_squeeze %99 : memref<1x1x256xf32, #tpu.memory_space<vmem>> -> memref<1x256xf32, #tpu.memory_space<vmem>>
      %101 = tpu.memref_slice %arg5[%c0_i32_75, %c2_i32_76] : memref<2x8x!tpu.dma_semaphore, #tpu.memory_space<semaphore_mem>> -> memref<1x1x!tpu.dma_semaphore, #tpu.memory_space<semaphore_mem>>
      %102 = tpu.memref_squeeze %101 : memref<1x1x!tpu.dma_semaphore, #tpu.memory_space<semaphore_mem>> -> memref<!tpu.dma_semaphore, #tpu.memory_space<semaphore_mem>>
      tpu.enqueue_dma source(%98 : memref<1x256xf32, #tpu.memory_space<any>>) target(%100 : memref<1x256xf32, #tpu.memory_space<vmem>>) target_semaphore(%102 : memref<!tpu.dma_semaphore, #tpu.memory_space<semaphore_mem>>)
      %c3_i32_80 = arith.constant 3 : i32
      %c3_i32_81 = arith.constant 3 : i32
      %103 = arith.minsi %c3_i32_80, %c3_i32_81 : i32
      %104 = arith.index_cast %103 : i32 to index
      %105 = memref.load %arg1[%104] : memref<4xi32, #tpu.memory_space<smem>>
      %c0_i32_82 = arith.constant 0 : i32
      %c0_i32_83 = arith.constant 0 : i32
      %c3_i32_84 = arith.constant 3 : i32
      %c0_i32_85 = arith.constant 0 : i32
      %106 = tpu.memref_slice %arg2[%103, %105, %c0_i32_85] : memref<4x4x256xf32, #tpu.memory_space<any>> -> memref<1x1x256xf32, #tpu.memory_space<any>>
      %107 = tpu.memref_squeeze %106 : memref<1x1x256xf32, #tpu.memory_space<any>> -> memref<1x256xf32, #tpu.memory_space<any>>
      %c3_i32_86 = arith.constant 3 : i32
      %c0_i32_87 = arith.constant 0 : i32
      %108 = tpu.memref_slice %arg4[%c0_i32_82, %c3_i32_86, %c0_i32_87] : memref<2x8x256xf32, #tpu.memory_space<vmem>> -> memref<1x1x256xf32, #tpu.memory_space<vmem>>
      %109 = tpu.memref_squeeze %108 : memref<1x1x256xf32, #tpu.memory_space<vmem>> -> memref<1x256xf32, #tpu.memory_space<vmem>>
      %110 = tpu.memref_slice %arg5[%c0_i32_83, %c3_i32_84] : memref<2x8x!tpu.dma_semaphore, #tpu.memory_space<semaphore_mem>> -> memref<1x1x!tpu.dma_semaphore, #tpu.memory_space<semaphore_mem>>
      %111 = tpu.memref_squeeze %110 : memref<1x1x!tpu.dma_semaphore, #tpu.memory_space<semaphore_mem>> -> memref<!tpu.dma_semaphore, #tpu.memory_space<semaphore_mem>>
      tpu.enqueue_dma source(%107 : memref<1x256xf32, #tpu.memory_space<any>>) target(%109 : memref<1x256xf32, #tpu.memory_space<vmem>>) target_semaphore(%111 : memref<!tpu.dma_semaphore, #tpu.memory_space<semaphore_mem>>)
      %c4_i32_88 = arith.constant 4 : i32
      %c3_i32_89 = arith.constant 3 : i32
      %112 = arith.minsi %c4_i32_88, %c3_i32_89 : i32
      %113 = arith.index_cast %112 : i32 to index
      %114 = memref.load %arg1[%113] : memref<4xi32, #tpu.memory_space<smem>>
      %c0_i32_90 = arith.constant 0 : i32
      %c0_i32_91 = arith.constant 0 : i32
      %c4_i32_92 = arith.constant 4 : i32
      %c0_i32_93 = arith.constant 0 : i32
      %115 = tpu.memref_slice %arg2[%112, %114, %c0_i32_93] : memref<4x4x256xf32, #tpu.memory_space<any>> -> memref<1x1x256xf32, #tpu.memory_space<any>>
      %116 = tpu.memref_squeeze %115 : memref<1x1x256xf32, #tpu.memory_space<any>> -> memref<1x256xf32, #tpu.memory_space<any>>
      %c4_i32_94 = arith.constant 4 : i32
      %c0_i32_95 = arith.constant 0 : i32
      %117 = tpu.memref_slice %arg4[%c0_i32_90, %c4_i32_94, %c0_i32_95] : memref<2x8x256xf32, #tpu.memory_space<vmem>> -> memref<1x1x256xf32, #tpu.memory_space<vmem>>
      %118 = tpu.memref_squeeze %117 : memref<1x1x256xf32, #tpu.memory_space<vmem>> -> memref<1x256xf32, #tpu.memory_space<vmem>>
      %119 = tpu.memref_slice %arg5[%c0_i32_91, %c4_i32_92] : memref<2x8x!tpu.dma_semaphore, #tpu.memory_space<semaphore_mem>> -> memref<1x1x!tpu.dma_semaphore, #tpu.memory_space<semaphore_mem>>
      %120 = tpu.memref_squeeze %119 : memref<1x1x!tpu.dma_semaphore, #tpu.memory_space<semaphore_mem>> -> memref<!tpu.dma_semaphore, #tpu.memory_space<semaphore_mem>>
      tpu.enqueue_dma source(%116 : memref<1x256xf32, #tpu.memory_space<any>>) target(%118 : memref<1x256xf32, #tpu.memory_space<vmem>>) target_semaphore(%120 : memref<!tpu.dma_semaphore, #tpu.memory_space<semaphore_mem>>)
      %c5_i32_96 = arith.constant 5 : i32
      %c3_i32_97 = arith.constant 3 : i32
      %121 = arith.minsi %c5_i32_96, %c3_i32_97 : i32
      %122 = arith.index_cast %121 : i32 to index
      %123 = memref.load %arg1[%122] : memref<4xi32, #tpu.memory_space<smem>>
      %c0_i32_98 = arith.constant 0 : i32
      %c0_i32_99 = arith.constant 0 : i32
      %c5_i32_100 = arith.constant 5 : i32
      %c0_i32_101 = arith.constant 0 : i32
      %124 = tpu.memref_slice %arg2[%121, %123, %c0_i32_101] : memref<4x4x256xf32, #tpu.memory_space<any>> -> memref<1x1x256xf32, #tpu.memory_space<any>>
      %125 = tpu.memref_squeeze %124 : memref<1x1x256xf32, #tpu.memory_space<any>> -> memref<1x256xf32, #tpu.memory_space<any>>
      %c5_i32_102 = arith.constant 5 : i32
      %c0_i32_103 = arith.constant 0 : i32
      %126 = tpu.memref_slice %arg4[%c0_i32_98, %c5_i32_102, %c0_i32_103] : memref<2x8x256xf32, #tpu.memory_space<vmem>> -> memref<1x1x256xf32, #tpu.memory_space<vmem>>
      %127 = tpu.memref_squeeze %126 : memref<1x1x256xf32, #tpu.memory_space<vmem>> -> memref<1x256xf32, #tpu.memory_space<vmem>>
      %128 = tpu.memref_slice %arg5[%c0_i32_99, %c5_i32_100] : memref<2x8x!tpu.dma_semaphore, #tpu.memory_space<semaphore_mem>> -> memref<1x1x!tpu.dma_semaphore, #tpu.memory_space<semaphore_mem>>
      %129 = tpu.memref_squeeze %128 : memref<1x1x!tpu.dma_semaphore, #tpu.memory_space<semaphore_mem>> -> memref<!tpu.dma_semaphore, #tpu.memory_space<semaphore_mem>>
      tpu.enqueue_dma source(%125 : memref<1x256xf32, #tpu.memory_space<any>>) target(%127 : memref<1x256xf32, #tpu.memory_space<vmem>>) target_semaphore(%129 : memref<!tpu.dma_semaphore, #tpu.memory_space<semaphore_mem>>)
      %c6_i32_104 = arith.constant 6 : i32
      %c3_i32_105 = arith.constant 3 : i32
      %130 = arith.minsi %c6_i32_104, %c3_i32_105 : i32
      %131 = arith.index_cast %130 : i32 to index
      %132 = memref.load %arg1[%131] : memref<4xi32, #tpu.memory_space<smem>>
      %c0_i32_106 = arith.constant 0 : i32
      %c0_i32_107 = arith.constant 0 : i32
      %c6_i32_108 = arith.constant 6 : i32
      %c0_i32_109 = arith.constant 0 : i32
      %133 = tpu.memref_slice %arg2[%130, %132, %c0_i32_109] : memref<4x4x256xf32, #tpu.memory_space<any>> -> memref<1x1x256xf32, #tpu.memory_space<any>>
      %134 = tpu.memref_squeeze %133 : memref<1x1x256xf32, #tpu.memory_space<any>> -> memref<1x256xf32, #tpu.memory_space<any>>
      %c6_i32_110 = arith.constant 6 : i32
      %c0_i32_111 = arith.constant 0 : i32
      %135 = tpu.memref_slice %arg4[%c0_i32_106, %c6_i32_110, %c0_i32_111] : memref<2x8x256xf32, #tpu.memory_space<vmem>> -> memref<1x1x256xf32, #tpu.memory_space<vmem>>
      %136 = tpu.memref_squeeze %135 : memref<1x1x256xf32, #tpu.memory_space<vmem>> -> memref<1x256xf32, #tpu.memory_space<vmem>>
      %137 = tpu.memref_slice %arg5[%c0_i32_107, %c6_i32_108] : memref<2x8x!tpu.dma_semaphore, #tpu.memory_space<semaphore_mem>> -> memref<1x1x!tpu.dma_semaphore, #tpu.memory_space<semaphore_mem>>
      %138 = tpu.memref_squeeze %137 : memref<1x1x!tpu.dma_semaphore, #tpu.memory_space<semaphore_mem>> -> memref<!tpu.dma_semaphore, #tpu.memory_space<semaphore_mem>>
      tpu.enqueue_dma source(%134 : memref<1x256xf32, #tpu.memory_space<any>>) target(%136 : memref<1x256xf32, #tpu.memory_space<vmem>>) target_semaphore(%138 : memref<!tpu.dma_semaphore, #tpu.memory_space<semaphore_mem>>)
      %c7_i32_112 = arith.constant 7 : i32
      %c3_i32_113 = arith.constant 3 : i32
      %139 = arith.minsi %c7_i32_112, %c3_i32_113 : i32
      %140 = arith.index_cast %139 : i32 to index
      %141 = memref.load %arg1[%140] : memref<4xi32, #tpu.memory_space<smem>>
      %c0_i32_114 = arith.constant 0 : i32
      %c0_i32_115 = arith.constant 0 : i32
      %c7_i32_116 = arith.constant 7 : i32
      %c0_i32_117 = arith.constant 0 : i32
      %142 = tpu.memref_slice %arg2[%139, %141, %c0_i32_117] : memref<4x4x256xf32, #tpu.memory_space<any>> -> memref<1x1x256xf32, #tpu.memory_space<any>>
      %143 = tpu.memref_squeeze %142 : memref<1x1x256xf32, #tpu.memory_space<any>> -> memref<1x256xf32, #tpu.memory_space<any>>
      %c7_i32_118 = arith.constant 7 : i32
      %c0_i32_119 = arith.constant 0 : i32
      %144 = tpu.memref_slice %arg4[%c0_i32_114, %c7_i32_118, %c0_i32_119] : memref<2x8x256xf32, #tpu.memory_space<vmem>> -> memref<1x1x256xf32, #tpu.memory_space<vmem>>
      %145 = tpu.memref_squeeze %144 : memref<1x1x256xf32, #tpu.memory_space<vmem>> -> memref<1x256xf32, #tpu.memory_space<vmem>>
      %146 = tpu.memref_slice %arg5[%c0_i32_115, %c7_i32_116] : memref<2x8x!tpu.dma_semaphore, #tpu.memory_space<semaphore_mem>> -> memref<1x1x!tpu.dma_semaphore, #tpu.memory_space<semaphore_mem>>
      %147 = tpu.memref_squeeze %146 : memref<1x1x!tpu.dma_semaphore, #tpu.memory_space<semaphore_mem>> -> memref<!tpu.dma_semaphore, #tpu.memory_space<semaphore_mem>>
      tpu.enqueue_dma source(%143 : memref<1x256xf32, #tpu.memory_space<any>>) target(%145 : memref<1x256xf32, #tpu.memory_space<vmem>>) target_semaphore(%147 : memref<!tpu.dma_semaphore, #tpu.memory_space<semaphore_mem>>)
    } else {
    }
    %c1_i32_5 = arith.constant 1 : i32
    %13 = arith.addi %arg0, %c1_i32_5 : i32
    %c1_i32_6 = arith.constant 1 : i32
    %14 = arith.cmpi slt, %13, %c1_i32_6 : i32
    %15 = arith.extui %14 : i1 to i32
    %c0_i32_7 = arith.constant 0 : i32
    %16 = arith.cmpi ne, %15, %c0_i32_7 : i32
    scf.if %16 {
      %c1_i32_56 = arith.constant 1 : i32
      %76 = arith.addi %arg0, %c1_i32_56 : i32
      %c1_i32_57 = arith.constant 1 : i32
      %77 = arith.subi %c1_i32_57, %9 : i32
      %c8_i32 = arith.constant 8 : i32
      %78 = arith.muli %76, %c8_i32 : i32
      %c0_i32_58 = arith.constant 0 : i32
      %79 = arith.addi %78, %c0_i32_58 : i32
      %c3_i32_59 = arith.constant 3 : i32
      %80 = arith.minsi %79, %c3_i32_59 : i32
      %81 = arith.index_cast %80 : i32 to index
      %82 = memref.load %arg1[%81] : memref<4xi32, #tpu.memory_space<smem>>
      %c0_i32_60 = arith.constant 0 : i32
      %c0_i32_61 = arith.constant 0 : i32
      %83 = tpu.memref_slice %arg2[%80, %82, %c0_i32_61] : memref<4x4x256xf32, #tpu.memory_space<any>> -> memref<1x1x256xf32, #tpu.memory_space<any>>
      %84 = tpu.memref_squeeze %83 : memref<1x1x256xf32, #tpu.memory_space<any>> -> memref<1x256xf32, #tpu.memory_space<any>>
      %c0_i32_62 = arith.constant 0 : i32
      %c0_i32_63 = arith.constant 0 : i32
      %85 = tpu.memref_slice %arg4[%77, %c0_i32_62, %c0_i32_63] : memref<2x8x256xf32, #tpu.memory_space<vmem>> -> memref<1x1x256xf32, #tpu.memory_space<vmem>>
      %86 = tpu.memref_squeeze %85 : memref<1x1x256xf32, #tpu.memory_space<vmem>> -> memref<1x256xf32, #tpu.memory_space<vmem>>
      %87 = tpu.memref_slice %arg5[%77, %c0_i32_60] : memref<2x8x!tpu.dma_semaphore, #tpu.memory_space<semaphore_mem>> -> memref<1x1x!tpu.dma_semaphore, #tpu.memory_space<semaphore_mem>>
      %88 = tpu.memref_squeeze %87 : memref<1x1x!tpu.dma_semaphore, #tpu.memory_space<semaphore_mem>> -> memref<!tpu.dma_semaphore, #tpu.memory_space<semaphore_mem>>
      tpu.enqueue_dma source(%84 : memref<1x256xf32, #tpu.memory_space<any>>) target(%86 : memref<1x256xf32, #tpu.memory_space<vmem>>) target_semaphore(%88 : memref<!tpu.dma_semaphore, #tpu.memory_space<semaphore_mem>>)
      %c1_i32_64 = arith.constant 1 : i32
      %89 = arith.addi %78, %c1_i32_64 : i32
      %c3_i32_65 = arith.constant 3 : i32
      %90 = arith.minsi %89, %c3_i32_65 : i32
      %91 = arith.index_cast %90 : i32 to index
      %92 = memref.load %arg1[%91] : memref<4xi32, #tpu.memory_space<smem>>
      %c1_i32_66 = arith.constant 1 : i32
      %c0_i32_67 = arith.constant 0 : i32
      %93 = tpu.memref_slice %arg2[%90, %92, %c0_i32_67] : memref<4x4x256xf32, #tpu.memory_space<any>> -> memref<1x1x256xf32, #tpu.memory_space<any>>
      %94 = tpu.memref_squeeze %93 : memref<1x1x256xf32, #tpu.memory_space<any>> -> memref<1x256xf32, #tpu.memory_space<any>>
      %c1_i32_68 = arith.constant 1 : i32
      %c0_i32_69 = arith.constant 0 : i32
      %95 = tpu.memref_slice %arg4[%77, %c1_i32_68, %c0_i32_69] : memref<2x8x256xf32, #tpu.memory_space<vmem>> -> memref<1x1x256xf32, #tpu.memory_space<vmem>>
      %96 = tpu.memref_squeeze %95 : memref<1x1x256xf32, #tpu.memory_space<vmem>> -> memref<1x256xf32, #tpu.memory_space<vmem>>
      %97 = tpu.memref_slice %arg5[%77, %c1_i32_66] : memref<2x8x!tpu.dma_semaphore, #tpu.memory_space<semaphore_mem>> -> memref<1x1x!tpu.dma_semaphore, #tpu.memory_space<semaphore_mem>>
      %98 = tpu.memref_squeeze %97 : memref<1x1x!tpu.dma_semaphore, #tpu.memory_space<semaphore_mem>> -> memref<!tpu.dma_semaphore, #tpu.memory_space<semaphore_mem>>
      tpu.enqueue_dma source(%94 : memref<1x256xf32, #tpu.memory_space<any>>) target(%96 : memref<1x256xf32, #tpu.memory_space<vmem>>) target_semaphore(%98 : memref<!tpu.dma_semaphore, #tpu.memory_space<semaphore_mem>>)
      %c2_i32_70 = arith.constant 2 : i32
      %99 = arith.addi %78, %c2_i32_70 : i32
      %c3_i32_71 = arith.constant 3 : i32
      %100 = arith.minsi %99, %c3_i32_71 : i32
      %101 = arith.index_cast %100 : i32 to index
      %102 = memref.load %arg1[%101] : memref<4xi32, #tpu.memory_space<smem>>
      %c2_i32_72 = arith.constant 2 : i32
      %c0_i32_73 = arith.constant 0 : i32
      %103 = tpu.memref_slice %arg2[%100, %102, %c0_i32_73] : memref<4x4x256xf32, #tpu.memory_space<any>> -> memref<1x1x256xf32, #tpu.memory_space<any>>
      %104 = tpu.memref_squeeze %103 : memref<1x1x256xf32, #tpu.memory_space<any>> -> memref<1x256xf32, #tpu.memory_space<any>>
      %c2_i32_74 = arith.constant 2 : i32
      %c0_i32_75 = arith.constant 0 : i32
      %105 = tpu.memref_slice %arg4[%77, %c2_i32_74, %c0_i32_75] : memref<2x8x256xf32, #tpu.memory_space<vmem>> -> memref<1x1x256xf32, #tpu.memory_space<vmem>>
      %106 = tpu.memref_squeeze %105 : memref<1x1x256xf32, #tpu.memory_space<vmem>> -> memref<1x256xf32, #tpu.memory_space<vmem>>
      %107 = tpu.memref_slice %arg5[%77, %c2_i32_72] : memref<2x8x!tpu.dma_semaphore, #tpu.memory_space<semaphore_mem>> -> memref<1x1x!tpu.dma_semaphore, #tpu.memory_space<semaphore_mem>>
      %108 = tpu.memref_squeeze %107 : memref<1x1x!tpu.dma_semaphore, #tpu.memory_space<semaphore_mem>> -> memref<!tpu.dma_semaphore, #tpu.memory_space<semaphore_mem>>
      tpu.enqueue_dma source(%104 : memref<1x256xf32, #tpu.memory_space<any>>) target(%106 : memref<1x256xf32, #tpu.memory_space<vmem>>) target_semaphore(%108 : memref<!tpu.dma_semaphore, #tpu.memory_space<semaphore_mem>>)
      %c3_i32_76 = arith.constant 3 : i32
      %109 = arith.addi %78, %c3_i32_76 : i32
      %c3_i32_77 = arith.constant 3 : i32
      %110 = arith.minsi %109, %c3_i32_77 : i32
      %111 = arith.index_cast %110 : i32 to index
      %112 = memref.load %arg1[%111] : memref<4xi32, #tpu.memory_space<smem>>
      %c3_i32_78 = arith.constant 3 : i32
      %c0_i32_79 = arith.constant 0 : i32
      %113 = tpu.memref_slice %arg2[%110, %112, %c0_i32_79] : memref<4x4x256xf32, #tpu.memory_space<any>> -> memref<1x1x256xf32, #tpu.memory_space<any>>
      %114 = tpu.memref_squeeze %113 : memref<1x1x256xf32, #tpu.memory_space<any>> -> memref<1x256xf32, #tpu.memory_space<any>>
      %c3_i32_80 = arith.constant 3 : i32
      %c0_i32_81 = arith.constant 0 : i32
      %115 = tpu.memref_slice %arg4[%77, %c3_i32_80, %c0_i32_81] : memref<2x8x256xf32, #tpu.memory_space<vmem>> -> memref<1x1x256xf32, #tpu.memory_space<vmem>>
      %116 = tpu.memref_squeeze %115 : memref<1x1x256xf32, #tpu.memory_space<vmem>> -> memref<1x256xf32, #tpu.memory_space<vmem>>
      %117 = tpu.memref_slice %arg5[%77, %c3_i32_78] : memref<2x8x!tpu.dma_semaphore, #tpu.memory_space<semaphore_mem>> -> memref<1x1x!tpu.dma_semaphore, #tpu.memory_space<semaphore_mem>>
      %118 = tpu.memref_squeeze %117 : memref<1x1x!tpu.dma_semaphore, #tpu.memory_space<semaphore_mem>> -> memref<!tpu.dma_semaphore, #tpu.memory_space<semaphore_mem>>
      tpu.enqueue_dma source(%114 : memref<1x256xf32, #tpu.memory_space<any>>) target(%116 : memref<1x256xf32, #tpu.memory_space<vmem>>) target_semaphore(%118 : memref<!tpu.dma_semaphore, #tpu.memory_space<semaphore_mem>>)
      %c4_i32_82 = arith.constant 4 : i32
      %119 = arith.addi %78, %c4_i32_82 : i32
      %c3_i32_83 = arith.constant 3 : i32
      %120 = arith.minsi %119, %c3_i32_83 : i32
      %121 = arith.index_cast %120 : i32 to index
      %122 = memref.load %arg1[%121] : memref<4xi32, #tpu.memory_space<smem>>
      %c4_i32_84 = arith.constant 4 : i32
      %c0_i32_85 = arith.constant 0 : i32
      %123 = tpu.memref_slice %arg2[%120, %122, %c0_i32_85] : memref<4x4x256xf32, #tpu.memory_space<any>> -> memref<1x1x256xf32, #tpu.memory_space<any>>
      %124 = tpu.memref_squeeze %123 : memref<1x1x256xf32, #tpu.memory_space<any>> -> memref<1x256xf32, #tpu.memory_space<any>>
      %c4_i32_86 = arith.constant 4 : i32
      %c0_i32_87 = arith.constant 0 : i32
      %125 = tpu.memref_slice %arg4[%77, %c4_i32_86, %c0_i32_87] : memref<2x8x256xf32, #tpu.memory_space<vmem>> -> memref<1x1x256xf32, #tpu.memory_space<vmem>>
      %126 = tpu.memref_squeeze %125 : memref<1x1x256xf32, #tpu.memory_space<vmem>> -> memref<1x256xf32, #tpu.memory_space<vmem>>
      %127 = tpu.memref_slice %arg5[%77, %c4_i32_84] : memref<2x8x!tpu.dma_semaphore, #tpu.memory_space<semaphore_mem>> -> memref<1x1x!tpu.dma_semaphore, #tpu.memory_space<semaphore_mem>>
      %128 = tpu.memref_squeeze %127 : memref<1x1x!tpu.dma_semaphore, #tpu.memory_space<semaphore_mem>> -> memref<!tpu.dma_semaphore, #tpu.memory_space<semaphore_mem>>
      tpu.enqueue_dma source(%124 : memref<1x256xf32, #tpu.memory_space<any>>) target(%126 : memref<1x256xf32, #tpu.memory_space<vmem>>) target_semaphore(%128 : memref<!tpu.dma_semaphore, #tpu.memory_space<semaphore_mem>>)
      %c5_i32_88 = arith.constant 5 : i32
      %129 = arith.addi %78, %c5_i32_88 : i32
      %c3_i32_89 = arith.constant 3 : i32
      %130 = arith.minsi %129, %c3_i32_89 : i32
      %131 = arith.index_cast %130 : i32 to index
      %132 = memref.load %arg1[%131] : memref<4xi32, #tpu.memory_space<smem>>
      %c5_i32_90 = arith.constant 5 : i32
      %c0_i32_91 = arith.constant 0 : i32
      %133 = tpu.memref_slice %arg2[%130, %132, %c0_i32_91] : memref<4x4x256xf32, #tpu.memory_space<any>> -> memref<1x1x256xf32, #tpu.memory_space<any>>
      %134 = tpu.memref_squeeze %133 : memref<1x1x256xf32, #tpu.memory_space<any>> -> memref<1x256xf32, #tpu.memory_space<any>>
      %c5_i32_92 = arith.constant 5 : i32
      %c0_i32_93 = arith.constant 0 : i32
      %135 = tpu.memref_slice %arg4[%77, %c5_i32_92, %c0_i32_93] : memref<2x8x256xf32, #tpu.memory_space<vmem>> -> memref<1x1x256xf32, #tpu.memory_space<vmem>>
      %136 = tpu.memref_squeeze %135 : memref<1x1x256xf32, #tpu.memory_space<vmem>> -> memref<1x256xf32, #tpu.memory_space<vmem>>
      %137 = tpu.memref_slice %arg5[%77, %c5_i32_90] : memref<2x8x!tpu.dma_semaphore, #tpu.memory_space<semaphore_mem>> -> memref<1x1x!tpu.dma_semaphore, #tpu.memory_space<semaphore_mem>>
      %138 = tpu.memref_squeeze %137 : memref<1x1x!tpu.dma_semaphore, #tpu.memory_space<semaphore_mem>> -> memref<!tpu.dma_semaphore, #tpu.memory_space<semaphore_mem>>
      tpu.enqueue_dma source(%134 : memref<1x256xf32, #tpu.memory_space<any>>) target(%136 : memref<1x256xf32, #tpu.memory_space<vmem>>) target_semaphore(%138 : memref<!tpu.dma_semaphore, #tpu.memory_space<semaphore_mem>>)
      %c6_i32_94 = arith.constant 6 : i32
      %139 = arith.addi %78, %c6_i32_94 : i32
      %c3_i32_95 = arith.constant 3 : i32
      %140 = arith.minsi %139, %c3_i32_95 : i32
      %141 = arith.index_cast %140 : i32 to index
      %142 = memref.load %arg1[%141] : memref<4xi32, #tpu.memory_space<smem>>
      %c6_i32_96 = arith.constant 6 : i32
      %c0_i32_97 = arith.constant 0 : i32
      %143 = tpu.memref_slice %arg2[%140, %142, %c0_i32_97] : memref<4x4x256xf32, #tpu.memory_space<any>> -> memref<1x1x256xf32, #tpu.memory_space<any>>
      %144 = tpu.memref_squeeze %143 : memref<1x1x256xf32, #tpu.memory_space<any>> -> memref<1x256xf32, #tpu.memory_space<any>>
      %c6_i32_98 = arith.constant 6 : i32
      %c0_i32_99 = arith.constant 0 : i32
      %145 = tpu.memref_slice %arg4[%77, %c6_i32_98, %c0_i32_99] : memref<2x8x256xf32, #tpu.memory_space<vmem>> -> memref<1x1x256xf32, #tpu.memory_space<vmem>>
      %146 = tpu.memref_squeeze %145 : memref<1x1x256xf32, #tpu.memory_space<vmem>> -> memref<1x256xf32, #tpu.memory_space<vmem>>
      %147 = tpu.memref_slice %arg5[%77, %c6_i32_96] : memref<2x8x!tpu.dma_semaphore, #tpu.memory_space<semaphore_mem>> -> memref<1x1x!tpu.dma_semaphore, #tpu.memory_space<semaphore_mem>>
      %148 = tpu.memref_squeeze %147 : memref<1x1x!tpu.dma_semaphore, #tpu.memory_space<semaphore_mem>> -> memref<!tpu.dma_semaphore, #tpu.memory_space<semaphore_mem>>
      tpu.enqueue_dma source(%144 : memref<1x256xf32, #tpu.memory_space<any>>) target(%146 : memref<1x256xf32, #tpu.memory_space<vmem>>) target_semaphore(%148 : memref<!tpu.dma_semaphore, #tpu.memory_space<semaphore_mem>>)
      %c7_i32_100 = arith.constant 7 : i32
      %149 = arith.addi %78, %c7_i32_100 : i32
      %c3_i32_101 = arith.constant 3 : i32
      %150 = arith.minsi %149, %c3_i32_101 : i32
      %151 = arith.index_cast %150 : i32 to index
      %152 = memref.load %arg1[%151] : memref<4xi32, #tpu.memory_space<smem>>
      %c7_i32_102 = arith.constant 7 : i32
      %c0_i32_103 = arith.constant 0 : i32
      %153 = tpu.memref_slice %arg2[%150, %152, %c0_i32_103] : memref<4x4x256xf32, #tpu.memory_space<any>> -> memref<1x1x256xf32, #tpu.memory_space<any>>
      %154 = tpu.memref_squeeze %153 : memref<1x1x256xf32, #tpu.memory_space<any>> -> memref<1x256xf32, #tpu.memory_space<any>>
      %c7_i32_104 = arith.constant 7 : i32
      %c0_i32_105 = arith.constant 0 : i32
      %155 = tpu.memref_slice %arg4[%77, %c7_i32_104, %c0_i32_105] : memref<2x8x256xf32, #tpu.memory_space<vmem>> -> memref<1x1x256xf32, #tpu.memory_space<vmem>>
      %156 = tpu.memref_squeeze %155 : memref<1x1x256xf32, #tpu.memory_space<vmem>> -> memref<1x256xf32, #tpu.memory_space<vmem>>
      %157 = tpu.memref_slice %arg5[%77, %c7_i32_102] : memref<2x8x!tpu.dma_semaphore, #tpu.memory_space<semaphore_mem>> -> memref<1x1x!tpu.dma_semaphore, #tpu.memory_space<semaphore_mem>>
      %158 = tpu.memref_squeeze %157 : memref<1x1x!tpu.dma_semaphore, #tpu.memory_space<semaphore_mem>> -> memref<!tpu.dma_semaphore, #tpu.memory_space<semaphore_mem>>
      tpu.enqueue_dma source(%154 : memref<1x256xf32, #tpu.memory_space<any>>) target(%156 : memref<1x256xf32, #tpu.memory_space<vmem>>) target_semaphore(%158 : memref<!tpu.dma_semaphore, #tpu.memory_space<semaphore_mem>>)
    } else {
    }
    %c0_i32_8 = arith.constant 0 : i32
    %c0_i32_9 = arith.constant 0 : i32
    %c0_i32_10 = arith.constant 0 : i32
    %c0_i32_11 = arith.constant 0 : i32
    %17 = tpu.memref_slice %arg2[%c0_i32_8, %c0_i32_10, %c0_i32_11] : memref<4x4x256xf32, #tpu.memory_space<any>> -> memref<1x1x256xf32, #tpu.memory_space<any>>
    %18 = tpu.memref_squeeze %17 : memref<1x1x256xf32, #tpu.memory_space<any>> -> memref<1x256xf32, #tpu.memory_space<any>>
    %c0_i32_12 = arith.constant 0 : i32
    %c0_i32_13 = arith.constant 0 : i32
    %19 = tpu.memref_slice %arg4[%9, %c0_i32_12, %c0_i32_13] : memref<2x8x256xf32, #tpu.memory_space<vmem>> -> memref<1x1x256xf32, #tpu.memory_space<vmem>>
    %20 = tpu.memref_squeeze %19 : memref<1x1x256xf32, #tpu.memory_space<vmem>> -> memref<1x256xf32, #tpu.memory_space<vmem>>
    %21 = tpu.memref_slice %arg5[%9, %c0_i32_9] : memref<2x8x!tpu.dma_semaphore, #tpu.memory_space<semaphore_mem>> -> memref<1x1x!tpu.dma_semaphore, #tpu.memory_space<semaphore_mem>>
    %22 = tpu.memref_squeeze %21 : memref<1x1x!tpu.dma_semaphore, #tpu.memory_space<semaphore_mem>> -> memref<!tpu.dma_semaphore, #tpu.memory_space<semaphore_mem>>
    tpu.wait_dma2 semaphore(%22 : memref<!tpu.dma_semaphore, #tpu.memory_space<semaphore_mem>>) src(%18 : memref<1x256xf32, #tpu.memory_space<any>>) dst(%20 : memref<1x256xf32, #tpu.memory_space<vmem>>)
    %c0_i32_14 = arith.constant 0 : i32
    %c1_i32_15 = arith.constant 1 : i32
    %c0_i32_16 = arith.constant 0 : i32
    %c0_i32_17 = arith.constant 0 : i32
    %23 = tpu.memref_slice %arg2[%c0_i32_14, %c0_i32_16, %c0_i32_17] : memref<4x4x256xf32, #tpu.memory_space<any>> -> memref<1x1x256xf32, #tpu.memory_space<any>>
    %24 = tpu.memref_squeeze %23 : memref<1x1x256xf32, #tpu.memory_space<any>> -> memref<1x256xf32, #tpu.memory_space<any>>
    %c1_i32_18 = arith.constant 1 : i32
    %c0_i32_19 = arith.constant 0 : i32
    %25 = tpu.memref_slice %arg4[%9, %c1_i32_18, %c0_i32_19] : memref<2x8x256xf32, #tpu.memory_space<vmem>> -> memref<1x1x256xf32, #tpu.memory_space<vmem>>
    %26 = tpu.memref_squeeze %25 : memref<1x1x256xf32, #tpu.memory_space<vmem>> -> memref<1x256xf32, #tpu.memory_space<vmem>>
    %27 = tpu.memref_slice %arg5[%9, %c1_i32_15] : memref<2x8x!tpu.dma_semaphore, #tpu.memory_space<semaphore_mem>> -> memref<1x1x!tpu.dma_semaphore, #tpu.memory_space<semaphore_mem>>
    %28 = tpu.memref_squeeze %27 : memref<1x1x!tpu.dma_semaphore, #tpu.memory_space<semaphore_mem>> -> memref<!tpu.dma_semaphore, #tpu.memory_space<semaphore_mem>>
    tpu.wait_dma2 semaphore(%28 : memref<!tpu.dma_semaphore, #tpu.memory_space<semaphore_mem>>) src(%24 : memref<1x256xf32, #tpu.memory_space<any>>) dst(%26 : memref<1x256xf32, #tpu.memory_space<vmem>>)
    %c0_i32_20 = arith.constant 0 : i32
    %c2_i32_21 = arith.constant 2 : i32
    %c0_i32_22 = arith.constant 0 : i32
    %c0_i32_23 = arith.constant 0 : i32
    %29 = tpu.memref_slice %arg2[%c0_i32_20, %c0_i32_22, %c0_i32_23] : memref<4x4x256xf32, #tpu.memory_space<any>> -> memref<1x1x256xf32, #tpu.memory_space<any>>
    %30 = tpu.memref_squeeze %29 : memref<1x1x256xf32, #tpu.memory_space<any>> -> memref<1x256xf32, #tpu.memory_space<any>>
    %c2_i32_24 = arith.constant 2 : i32
    %c0_i32_25 = arith.constant 0 : i32
    %31 = tpu.memref_slice %arg4[%9, %c2_i32_24, %c0_i32_25] : memref<2x8x256xf32, #tpu.memory_space<vmem>> -> memref<1x1x256xf32, #tpu.memory_space<vmem>>
    %32 = tpu.memref_squeeze %31 : memref<1x1x256xf32, #tpu.memory_space<vmem>> -> memref<1x256xf32, #tpu.memory_space<vmem>>
    %33 = tpu.memref_slice %arg5[%9, %c2_i32_21] : memref<2x8x!tpu.dma_semaphore, #tpu.memory_space<semaphore_mem>> -> memref<1x1x!tpu.dma_semaphore, #tpu.memory_space<semaphore_mem>>
    %34 = tpu.memref_squeeze %33 : memref<1x1x!tpu.dma_semaphore, #tpu.memory_space<semaphore_mem>> -> memref<!tpu.dma_semaphore, #tpu.memory_space<semaphore_mem>>
    tpu.wait_dma2 semaphore(%34 : memref<!tpu.dma_semaphore, #tpu.memory_space<semaphore_mem>>) src(%30 : memref<1x256xf32, #tpu.memory_space<any>>) dst(%32 : memref<1x256xf32, #tpu.memory_space<vmem>>)
    %c0_i32_26 = arith.constant 0 : i32
    %c3_i32 = arith.constant 3 : i32
    %c0_i32_27 = arith.constant 0 : i32
    %c0_i32_28 = arith.constant 0 : i32
    %35 = tpu.memref_slice %arg2[%c0_i32_26, %c0_i32_27, %c0_i32_28] : memref<4x4x256xf32, #tpu.memory_space<any>> -> memref<1x1x256xf32, #tpu.memory_space<any>>
    %36 = tpu.memref_squeeze %35 : memref<1x1x256xf32, #tpu.memory_space<any>> -> memref<1x256xf32, #tpu.memory_space<any>>
    %c3_i32_29 = arith.constant 3 : i32
    %c0_i32_30 = arith.constant 0 : i32
    %37 = tpu.memref_slice %arg4[%9, %c3_i32_29, %c0_i32_30] : memref<2x8x256xf32, #tpu.memory_space<vmem>> -> memref<1x1x256xf32, #tpu.memory_space<vmem>>
    %38 = tpu.memref_squeeze %37 : memref<1x1x256xf32, #tpu.memory_space<vmem>> -> memref<1x256xf32, #tpu.memory_space<vmem>>
    %39 = tpu.memref_slice %arg5[%9, %c3_i32] : memref<2x8x!tpu.dma_semaphore, #tpu.memory_space<semaphore_mem>> -> memref<1x1x!tpu.dma_semaphore, #tpu.memory_space<semaphore_mem>>
    %40 = tpu.memref_squeeze %39 : memref<1x1x!tpu.dma_semaphore, #tpu.memory_space<semaphore_mem>> -> memref<!tpu.dma_semaphore, #tpu.memory_space<semaphore_mem>>
    tpu.wait_dma2 semaphore(%40 : memref<!tpu.dma_semaphore, #tpu.memory_space<semaphore_mem>>) src(%36 : memref<1x256xf32, #tpu.memory_space<any>>) dst(%38 : memref<1x256xf32, #tpu.memory_space<vmem>>)
    %c0_i32_31 = arith.constant 0 : i32
    %c4_i32 = arith.constant 4 : i32
    %c0_i32_32 = arith.constant 0 : i32
    %c0_i32_33 = arith.constant 0 : i32
    %41 = tpu.memref_slice %arg2[%c0_i32_31, %c0_i32_32, %c0_i32_33] : memref<4x4x256xf32, #tpu.memory_space<any>> -> memref<1x1x256xf32, #tpu.memory_space<any>>
    %42 = tpu.memref_squeeze %41 : memref<1x1x256xf32, #tpu.memory_space<any>> -> memref<1x256xf32, #tpu.memory_space<any>>
    %c4_i32_34 = arith.constant 4 : i32
    %c0_i32_35 = arith.constant 0 : i32
    %43 = tpu.memref_slice %arg4[%9, %c4_i32_34, %c0_i32_35] : memref<2x8x256xf32, #tpu.memory_space<vmem>> -> memref<1x1x256xf32, #tpu.memory_space<vmem>>
    %44 = tpu.memref_squeeze %43 : memref<1x1x256xf32, #tpu.memory_space<vmem>> -> memref<1x256xf32, #tpu.memory_space<vmem>>
    %45 = tpu.memref_slice %arg5[%9, %c4_i32] : memref<2x8x!tpu.dma_semaphore, #tpu.memory_space<semaphore_mem>> -> memref<1x1x!tpu.dma_semaphore, #tpu.memory_space<semaphore_mem>>
    %46 = tpu.memref_squeeze %45 : memref<1x1x!tpu.dma_semaphore, #tpu.memory_space<semaphore_mem>> -> memref<!tpu.dma_semaphore, #tpu.memory_space<semaphore_mem>>
    tpu.wait_dma2 semaphore(%46 : memref<!tpu.dma_semaphore, #tpu.memory_space<semaphore_mem>>) src(%42 : memref<1x256xf32, #tpu.memory_space<any>>) dst(%44 : memref<1x256xf32, #tpu.memory_space<vmem>>)
    %c0_i32_36 = arith.constant 0 : i32
    %c5_i32 = arith.constant 5 : i32
    %c0_i32_37 = arith.constant 0 : i32
    %c0_i32_38 = arith.constant 0 : i32
    %47 = tpu.memref_slice %arg2[%c0_i32_36, %c0_i32_37, %c0_i32_38] : memref<4x4x256xf32, #tpu.memory_space<any>> -> memref<1x1x256xf32, #tpu.memory_space<any>>
    %48 = tpu.memref_squeeze %47 : memref<1x1x256xf32, #tpu.memory_space<any>> -> memref<1x256xf32, #tpu.memory_space<any>>
    %c5_i32_39 = arith.constant 5 : i32
    %c0_i32_40 = arith.constant 0 : i32
    %49 = tpu.memref_slice %arg4[%9, %c5_i32_39, %c0_i32_40] : memref<2x8x256xf32, #tpu.memory_space<vmem>> -> memref<1x1x256xf32, #tpu.memory_space<vmem>>
    %50 = tpu.memref_squeeze %49 : memref<1x1x256xf32, #tpu.memory_space<vmem>> -> memref<1x256xf32, #tpu.memory_space<vmem>>
    %51 = tpu.memref_slice %arg5[%9, %c5_i32] : memref<2x8x!tpu.dma_semaphore, #tpu.memory_space<semaphore_mem>> -> memref<1x1x!tpu.dma_semaphore, #tpu.memory_space<semaphore_mem>>
    %52 = tpu.memref_squeeze %51 : memref<1x1x!tpu.dma_semaphore, #tpu.memory_space<semaphore_mem>> -> memref<!tpu.dma_semaphore, #tpu.memory_space<semaphore_mem>>
    tpu.wait_dma2 semaphore(%52 : memref<!tpu.dma_semaphore, #tpu.memory_space<semaphore_mem>>) src(%48 : memref<1x256xf32, #tpu.memory_space<any>>) dst(%50 : memref<1x256xf32, #tpu.memory_space<vmem>>)
    %c0_i32_41 = arith.constant 0 : i32
    %c6_i32 = arith.constant 6 : i32
    %c0_i32_42 = arith.constant 0 : i32
    %c0_i32_43 = arith.constant 0 : i32
    %53 = tpu.memref_slice %arg2[%c0_i32_41, %c0_i32_42, %c0_i32_43] : memref<4x4x256xf32, #tpu.memory_space<any>> -> memref<1x1x256xf32, #tpu.memory_space<any>>
    %54 = tpu.memref_squeeze %53 : memref<1x1x256xf32, #tpu.memory_space<any>> -> memref<1x256xf32, #tpu.memory_space<any>>
    %c6_i32_44 = arith.constant 6 : i32
    %c0_i32_45 = arith.constant 0 : i32
    %55 = tpu.memref_slice %arg4[%9, %c6_i32_44, %c0_i32_45] : memref<2x8x256xf32, #tpu.memory_space<vmem>> -> memref<1x1x256xf32, #tpu.memory_space<vmem>>
    %56 = tpu.memref_squeeze %55 : memref<1x1x256xf32, #tpu.memory_space<vmem>> -> memref<1x256xf32, #tpu.memory_space<vmem>>
    %57 = tpu.memref_slice %arg5[%9, %c6_i32] : memref<2x8x!tpu.dma_semaphore, #tpu.memory_space<semaphore_mem>> -> memref<1x1x!tpu.dma_semaphore, #tpu.memory_space<semaphore_mem>>
    %58 = tpu.memref_squeeze %57 : memref<1x1x!tpu.dma_semaphore, #tpu.memory_space<semaphore_mem>> -> memref<!tpu.dma_semaphore, #tpu.memory_space<semaphore_mem>>
    tpu.wait_dma2 semaphore(%58 : memref<!tpu.dma_semaphore, #tpu.memory_space<semaphore_mem>>) src(%54 : memref<1x256xf32, #tpu.memory_space<any>>) dst(%56 : memref<1x256xf32, #tpu.memory_space<vmem>>)
    %c0_i32_46 = arith.constant 0 : i32
    %c7_i32 = arith.constant 7 : i32
    %c0_i32_47 = arith.constant 0 : i32
    %c0_i32_48 = arith.constant 0 : i32
    %59 = tpu.memref_slice %arg2[%c0_i32_46, %c0_i32_47, %c0_i32_48] : memref<4x4x256xf32, #tpu.memory_space<any>> -> memref<1x1x256xf32, #tpu.memory_space<any>>
    %60 = tpu.memref_squeeze %59 : memref<1x1x256xf32, #tpu.memory_space<any>> -> memref<1x256xf32, #tpu.memory_space<any>>
    %c7_i32_49 = arith.constant 7 : i32
    %c0_i32_50 = arith.constant 0 : i32
    %61 = tpu.memref_slice %arg4[%9, %c7_i32_49, %c0_i32_50] : memref<2x8x256xf32, #tpu.memory_space<vmem>> -> memref<1x1x256xf32, #tpu.memory_space<vmem>>
    %62 = tpu.memref_squeeze %61 : memref<1x1x256xf32, #tpu.memory_space<vmem>> -> memref<1x256xf32, #tpu.memory_space<vmem>>
    %63 = tpu.memref_slice %arg5[%9, %c7_i32] : memref<2x8x!tpu.dma_semaphore, #tpu.memory_space<semaphore_mem>> -> memref<1x1x!tpu.dma_semaphore, #tpu.memory_space<semaphore_mem>>
    %64 = tpu.memref_squeeze %63 : memref<1x1x!tpu.dma_semaphore, #tpu.memory_space<semaphore_mem>> -> memref<!tpu.dma_semaphore, #tpu.memory_space<semaphore_mem>>
    tpu.wait_dma2 semaphore(%64 : memref<!tpu.dma_semaphore, #tpu.memory_space<semaphore_mem>>) src(%60 : memref<1x256xf32, #tpu.memory_space<any>>) dst(%62 : memref<1x256xf32, #tpu.memory_space<vmem>>)
    %65 = arith.index_cast %9 : i32 to index
    %c0 = arith.constant 0 : index
    %c0_51 = arith.constant 0 : index
    %66 = vector.load %arg4[%65, %c0, %c0_51] : memref<2x8x256xf32, #tpu.memory_space<vmem>>, vector<1x8x256xf32>
    %67 = vector.shape_cast %66 : vector<1x8x256xf32> to vector<8x256xf32>
    %cst = arith.constant 0.000000e+00 : f32
    %68 = vector.broadcast %cst : f32 to vector<8x256xf32>
    %69 = arith.subf %68, %67 : vector<8x256xf32>
    %70 = math.exp %69 : vector<8x256xf32>
    %cst_52 = arith.constant 1.000000e+00 : f32
    %71 = vector.broadcast %cst_52 : f32 to vector<8x256xf32>
    %72 = arith.addf %71, %70 : vector<8x256xf32>
    %cst_53 = arith.constant 1.000000e+00 : f32
    %73 = vector.broadcast %cst_53 : f32 to vector<8x256xf32>
    %74 = arith.divf %73, %72 : vector<8x256xf32>
    %c0_54 = arith.constant 0 : index
    %c0_55 = arith.constant 0 : index
    %75 = vector.load %arg3[%c0_54, %c0_55] : memref<8x256xf32, #tpu.memory_space<vmem>>, vector<8x256xf32>
    tpu.vector_store %arg3[%c0_54, %c0_55], %74 {strides = array<i32>} : memref<8x256xf32, #tpu.memory_space<vmem>>, vector<8x256xf32>,
    return
  }
  func.func @transform_1(%arg0: i32, %arg1: memref<4xi32, #tpu.memory_space<smem>>) -> (i32, i32) {
    %c0_i32 = arith.constant 0 : i32
    %c0_i32_0 = arith.constant 0 : i32
    return %arg0, %c0_i32 : i32, i32
  }
}

</mosaic_0001>

<llo_original>
// kernel: tpu_custom_call.1
$region0: #{tpu_custom_call.1}
  #allocation0 [shape = 'u32[]', space=smem, size = 0x4, offset = 0x4, fixed_abs, tag = 'smem constant byte address 0x4 - core index']
  #allocation1 [shape = 'u32[144,128]{1,0:T(1,128)}', space=vmem, size = 0x12000, scoped, tag = 'internal scratch']
  #allocation2 [shape = 'f32[2,8,256]{2,1,0:T(8,128)}', space=vmem, size = 0x4000, scoped, tag = 'scratch operand']
  #allocation3 [shape = 's32[16]{0}', space=sflag, size = 0x40, scoped, tag = 'scratch operand']
  #allocation4 [shape = 's32[1]{0}', space=sflag, size = 0x4, scoped, tag = 'scoped memory for tpu_custom_call.1']
  #allocation5 [shape = 'u8[512]{0}', space=smem, size = 0x200, scoped, tag = 'prefetched SMEM operand 0']
  #allocation8 [shape = 's32[]', space=sflag, size = 0x4, offset = 0, fixed_abs, tag = 'sflag constant byte address 0x0 - dummy sync flag']
  #allocation9 [shape = 's32[]', space=sflag, size = 0x4, offset = 0, fixed_abs, tag = 'sflag constant byte address 0x0 - dummy sync flag']
  #allocation10 [shape = 's32[]', space=sflag, size = 0x4, offset = 0, fixed_abs, tag = 'sflag constant byte address 0x0 - dummy sync flag']
  #allocation11 [shape = 's32[]', space=sflag, size = 0x4, offset = 0, fixed_abs, tag = 'sflag constant byte address 0x0 - dummy sync flag']
  #allocation12 [shape = 's32[]', space=sflag, size = 0x4, offset = 0, fixed_abs, tag = 'sflag constant byte address 0x0 - dummy sync flag']
  #allocation13 [shape = 's32[]', space=sflag, size = 0x4, offset = 0, fixed_abs, tag = 'sflag constant byte address 0x0 - dummy sync flag']
  #allocation14 [shape = 's32[]', space=sflag, size = 0x4, offset = 0, fixed_abs, tag = 'sflag constant byte address 0x0 - dummy sync flag']
  #allocation15 [shape = 's32[]', space=sflag, size = 0x4, offset = 0, fixed_abs, tag = 'sflag constant byte address 0x0 - dummy sync flag']
  #allocation16 [shape = 's32[]', space=sflag, size = 0x4, offset = 0, fixed_abs, tag = 'sflag constant byte address 0x0 - dummy sync flag']
  #allocation17 [shape = 's32[]', space=sflag, size = 0x4, offset = 0, fixed_abs, tag = 'sflag constant byte address 0x0 - dummy sync flag']
  #allocation18 [shape = 's32[]', space=sflag, size = 0x4, offset = 0, fixed_abs, tag = 'sflag constant byte address 0x0 - dummy sync flag']
  #allocation19 [shape = 's32[]', space=sflag, size = 0x4, offset = 0, fixed_abs, tag = 'sflag constant byte address 0x0 - dummy sync flag']
  #allocation20 [shape = 's32[]', space=sflag, size = 0x4, offset = 0, fixed_abs, tag = 'sflag constant byte address 0x0 - dummy sync flag']
  #allocation21 [shape = 's32[]', space=sflag, size = 0x4, offset = 0, fixed_abs, tag = 'sflag constant byte address 0x0 - dummy sync flag']
  #allocation22 [shape = 's32[]', space=sflag, size = 0x4, offset = 0, fixed_abs, tag = 'sflag constant byte address 0x0 - dummy sync flag']
  #allocation23 [shape = 's32[]', space=sflag, size = 0x4, offset = 0, fixed_abs, tag = 'sflag constant byte address 0x0 - dummy sync flag']
  %s0 = inlined_call_operand.hbm [shape: s32[4], index: 0, kind: input, shape index: {}]
  %s1 = inlined_call_operand.hbm [shape: f32[4,4,256], index: 1, kind: input, shape index: {}]
  %s2 = inlined_call_operand.hbm [shape: f32[8,256], index: 2, kind: output, shape index: {}]
  %s3 = sld [smem:[#allocation0]]
  $region18: #{tpu_custom_call.1} parent=0
    _
  %s5 = ssub.s32 1, %s3
  %s6 = scalar_select 0, %s5, %s3
  %8 = dma.hbm_to_smem %s0, 16, [#allocation5], [#allocation4]
  %9 = dma.done [#allocation4], 16
  %10 = sfence
  $region1: #{tpu_custom_call.1} parent=0
    #allocation6 [shape = 'u8[8192]{0}', space=vmem, size = 0x2000, scoped, tag = 'output window, operand 0, single buffered']
    #allocation7 [shape = 's32[1]{0}', space=sflag, size = 0x4, scoped, tag = 'scoped memory for tpu_custom_call.1']
    %11 = vsyncpa [#allocation7], 0
    %s12 = ssub.s32 0, 0
    %s13 = ssub.s32 0, 0
    %p14 = scmp.ne.s32.totalorder 0, 0
    %p15 = scmp.lt.s32.totalorder 0, 0
    %p16 = pnand %p15, %p14
    %p17 = pneg %p16
    %s18 = sadd.s32 0, 2
    %s19 = scalar_select %p17, %s18, 0
    %p20 = scmp.eq.s32.totalorder 0, 0
    // Predicated region
    $region2: #{tpu_custom_call.1} parent=1 // pred_check
      %p21 = pneg %p20
    $region3: #{tpu_custom_call.1} parent=1 // pred_check_branch
      %23 = sbr.rel (%p21) target = $region5
    $region4: #{tpu_custom_call.1} parent=1 // pred_region
      %s24 = sld [smem:[#allocation5]]
      %s25 = sshrl.u32 %s24, 2
      %s26 = sand.u32 %s24, 3
      %s27 = smul.u32 %s25, 8
      %s28 = sadd.s32 %s26, %s27
      %s29 = smul.addr %s28, 16
      %s30 = scalar_lea.hbm %s1, %s29
      %s32 = sshll.u32 [#allocation2], 4
      %s33 = int_to_ptr.vmem [resolvable:$true] %s32
      %35 = dma.hbm_to_vmem [thread:$0]  %s30, 32, %s33, [#allocation3], 64, 128, 1
      %s36 = sld [smem:[#allocation5 + $0x1]]
      %s37 = sshrl.u32 %s36, 2
      %s38 = sand.u32 %s36, 3
      %s39 = smul.u32 %s37, 8
      %s40 = sadd.s32 %s38, %s39
      %s41 = sadd.s32 %s40, 8
      %s42 = smul.addr %s41, 16
      %s43 = scalar_lea.hbm %s1, %s42
      %s44 = scalar_lea.vmem [#allocation2], 1
      %s45 = scalar_lea.sflag [#allocation3], 1
      %s47 = sshll.u32 %s44, 4
      %s48 = int_to_ptr.vmem [resolvable:$true] %s47
      %50 = dma.hbm_to_vmem [thread:$0]  %s43, 32, %s48, %s45, 64, 128, 1
      %s51 = sld [smem:[#allocation5 + $0x2]]
      %s52 = sshrl.u32 %s51, 2
      %s53 = sand.u32 %s51, 3
      %s54 = smul.u32 %s52, 8
      %s55 = sadd.s32 %s53, %s54
      %s56 = sadd.s32 %s55, 16
      %s57 = smul.addr %s56, 16
      %s58 = scalar_lea.hbm %s1, %s57
      %s59 = scalar_lea.vmem [#allocation2], 2
      %s60 = scalar_lea.sflag [#allocation3], 2
      %s62 = sshll.u32 %s59, 4
      %s63 = int_to_ptr.vmem [resolvable:$true] %s62
      %65 = dma.hbm_to_vmem [thread:$0]  %s58, 32, %s63, %s60, 64, 128, 1
      %s66 = sld [smem:[#allocation5 + $0x3]]
      %s67 = sshrl.u32 %s66, 2
      %s68 = sand.u32 %s66, 3
      %s69 = smul.u32 %s67, 8
      %s70 = sadd.s32 %s68, %s69
      %s71 = sadd.s32 %s70, 24
      %s72 = smul.addr %s71, 16
      %s73 = scalar_lea.hbm %s1, %s72
      %s74 = scalar_lea.vmem [#allocation2], 3
      %s75 = scalar_lea.sflag [#allocation3], 3
      %s77 = sshll.u32 %s74, 4
      %s78 = int_to_ptr.vmem [resolvable:$true] %s77
      %80 = dma.hbm_to_vmem [thread:$0]  %s73, 32, %s78, %s75, 64, 128, 1
      %s81 = sld [smem:[#allocation5 + $0x3]]
      %s82 = sshrl.u32 %s81, 2
      %s83 = sand.u32 %s81, 3
      %s84 = smul.u32 %s82, 8
      %s85 = sadd.s32 %s83, %s84
      %s86 = sadd.s32 %s85, 24
      %s87 = smul.addr %s86, 16
      %s88 = scalar_lea.hbm %s1, %s87
      %s89 = scalar_lea.vmem [#allocation2], 4
      %s90 = scalar_lea.sflag [#allocation3], 4
      %s92 = sshll.u32 %s89, 4
      %s93 = int_to_ptr.vmem [resolvable:$true] %s92
      %95 = dma.hbm_to_vmem [thread:$0]  %s88, 32, %s93, %s90, 64, 128, 1
      %s96 = sld [smem:[#allocation5 + $0x3]]
      %s97 = sshrl.u32 %s96, 2
      %s98 = sand.u32 %s96, 3
      %s99 = smul.u32 %s97, 8
      %s100 = sadd.s32 %s98, %s99
      %s101 = sadd.s32 %s100, 24
      %s102 = smul.addr %s101, 16
      %s103 = scalar_lea.hbm %s1, %s102
      %s104 = scalar_lea.vmem [#allocation2], 5
      %s105 = scalar_lea.sflag [#allocation3], 5
      %s107 = sshll.u32 %s104, 4
      %s108 = int_to_ptr.vmem [resolvable:$true] %s107
      %110 = dma.hbm_to_vmem [thread:$0]  %s103, 32, %s108, %s105, 64, 128, 1
      %s111 = sld [smem:[#allocation5 + $0x3]]
      %s112 = sshrl.u32 %s111, 2
      %s113 = sand.u32 %s111, 3
      %s114 = smul.u32 %s112, 8
      %s115 = sadd.s32 %s113, %s114
      %s116 = sadd.s32 %s115, 24
      %s117 = smul.addr %s116, 16
      %s118 = scalar_lea.hbm %s1, %s117
      %s119 = scalar_lea.vmem [#allocation2], 6
      %s120 = scalar_lea.sflag [#allocation3], 6
      %s122 = sshll.u32 %s119, 4
      %s123 = int_to_ptr.vmem [resolvable:$true] %s122
      %125 = dma.hbm_to_vmem [thread:$0]  %s118, 32, %s123, %s120, 64, 128, 1
      %s126 = sld [smem:[#allocation5 + $0x3]]
      %s127 = sshrl.u32 %s126, 2
      %s128 = sand.u32 %s126, 3
      %s129 = smul.u32 %s127, 8
      %s130 = sadd.s32 %s128, %s129
      %s131 = sadd.s32 %s130, 24
      %s132 = smul.addr %s131, 16
      %s133 = scalar_lea.hbm %s1, %s132
      %s134 = scalar_lea.vmem [#allocation2], 7
      %s135 = scalar_lea.sflag [#allocation3], 7
      %s137 = sshll.u32 %s134, 4
      %s138 = int_to_ptr.vmem [resolvable:$true] %s137
      %140 = dma.hbm_to_vmem [thread:$0]  %s133, 32, %s138, %s135, 64, 128, 1
    $region5: #{tpu_custom_call.1} parent=1 // pred_fallthru
      _
    %s141 = sadd.s32 0, 1
    %p142 = scmp.lt.s32.totalorder %s141, 1
    // Predicated region
    $region6: #{tpu_custom_call.1} parent=1 // pred_check
      %p143 = pneg %p142
    $region7: #{tpu_custom_call.1} parent=1 // pred_check_branch
      %145 = sbr.rel (%p143) target = $region9
    $region8: #{tpu_custom_call.1} parent=1 // pred_region
      %s146 = ssub.s32 1, %s19
      %s147 = smul.u32 %s141, 8
      %p148 = scmp.lt.s32.totalorder %s147, 3
      %s149 = scalar_select %p148, %s147, 3
      %s150 = sld [smem:[#allocation5 + %s149]]
      %s151 = sshrl.u32 %s150, 2
      %s152 = sand.u32 %s150, 3
      %s153 = smul.u32 %s151, 8
      %s154 = sadd.s32 %s152, %s153
      %s155 = smul.u32 %s149, 8
      %s156 = sadd.s32 %s154, %s155
      %s157 = smul.addr %s156, 16
      %s158 = scalar_lea.hbm %s1, %s157
      %s159 = smul.u32 %s146, 16
      %s160 = scalar_lea.vmem [#allocation2], %s159
      %s161 = smul.u32 %s146, 8
      %s162 = scalar_lea.sflag [#allocation3], %s161
      %s164 = sshll.u32 %s160, 4
      %s165 = int_to_ptr.vmem [resolvable:$true] %s164
      %167 = dma.hbm_to_vmem [thread:$0]  %s158, 32, %s165, %s162, 64, 128, 1
      %s168 = sadd.s32 %s147, 1
      %p169 = scmp.lt.s32.totalorder %s168, 3
      %s170 = scalar_select %p169, %s168, 3
      %s171 = sld [smem:[#allocation5 + %s170]]
      %s172 = sshrl.u32 %s171, 2
      %s173 = sand.u32 %s171, 3
      %s174 = smul.u32 %s172, 8
      %s175 = sadd.s32 %s173, %s174
      %s176 = smul.u32 %s170, 8
      %s177 = sadd.s32 %s175, %s176
      %s178 = smul.addr %s177, 16
      %s179 = scalar_lea.hbm %s1, %s178
      %s180 = sadd.s32 1, %s159
      %s181 = scalar_lea.vmem [#allocation2], %s180
      %s182 = sadd.s32 1, %s161
      %s183 = scalar_lea.sflag [#allocation3], %s182
      %s185 = sshll.u32 %s181, 4
      %s186 = int_to_ptr.vmem [resolvable:$true] %s185
      %188 = dma.hbm_to_vmem [thread:$0]  %s179, 32, %s186, %s183, 64, 128, 1
      %s189 = sadd.s32 %s147, 2
      %p190 = scmp.lt.s32.totalorder %s189, 3
      %s191 = scalar_select %p190, %s189, 3
      %s192 = sld [smem:[#allocation5 + %s191]]
      %s193 = sshrl.u32 %s192, 2
      %s194 = sand.u32 %s192, 3
      %s195 = smul.u32 %s193, 8
      %s196 = sadd.s32 %s194, %s195
      %s197 = smul.u32 %s191, 8
      %s198 = sadd.s32 %s196, %s197
      %s199 = smul.addr %s198, 16
      %s200 = scalar_lea.hbm %s1, %s199
      %s201 = sadd.s32 2, %s159
      %s202 = scalar_lea.vmem [#allocation2], %s201
      %s203 = sadd.s32 2, %s161
      %s204 = scalar_lea.sflag [#allocation3], %s203
      %s206 = sshll.u32 %s202, 4
      %s207 = int_to_ptr.vmem [resolvable:$true] %s206
      %209 = dma.hbm_to_vmem [thread:$0]  %s200, 32, %s207, %s204, 64, 128, 1
      %s210 = sadd.s32 %s147, 3
      %p211 = scmp.lt.s32.totalorder %s210, 3
      %s212 = scalar_select %p211, %s210, 3
      %s213 = sld [smem:[#allocation5 + %s212]]
      %s214 = sshrl.u32 %s213, 2
      %s215 = sand.u32 %s213, 3
      %s216 = smul.u32 %s214, 8
      %s217 = sadd.s32 %s215, %s216
      %s218 = smul.u32 %s212, 8
      %s219 = sadd.s32 %s217, %s218
      %s220 = smul.addr %s219, 16
      %s221 = scalar_lea.hbm %s1, %s220
      %s222 = sadd.s32 3, %s159
      %s223 = scalar_lea.vmem [#allocation2], %s222
      %s224 = sadd.s32 3, %s161
      %s225 = scalar_lea.sflag [#allocation3], %s224
      %s227 = sshll.u32 %s223, 4
      %s228 = int_to_ptr.vmem [resolvable:$true] %s227
      %230 = dma.hbm_to_vmem [thread:$0]  %s221, 32, %s228, %s225, 64, 128, 1
      %s231 = sadd.s32 %s147, 4
      %p232 = scmp.lt.s32.totalorder %s231, 3
      %s233 = scalar_select %p232, %s231, 3
      %s234 = sld [smem:[#allocation5 + %s233]]
      %s235 = sshrl.u32 %s234, 2
      %s236 = sand.u32 %s234, 3
      %s237 = smul.u32 %s235, 8
      %s238 = sadd.s32 %s236, %s237
      %s239 = smul.u32 %s233, 8
      %s240 = sadd.s32 %s238, %s239
      %s241 = smul.addr %s240, 16
      %s242 = scalar_lea.hbm %s1, %s241
      %s243 = sadd.s32 4, %s159
      %s244 = scalar_lea.vmem [#allocation2], %s243
      %s245 = sadd.s32 4, %s161
      %s246 = scalar_lea.sflag [#allocation3], %s245
      %s248 = sshll.u32 %s244, 4
      %s249 = int_to_ptr.vmem [resolvable:$true] %s248
      %251 = dma.hbm_to_vmem [thread:$0]  %s242, 32, %s249, %s246, 64, 128, 1
      %s252 = sadd.s32 %s147, 5
      %p253 = scmp.lt.s32.totalorder %s252, 3
      %s254 = scalar_select %p253, %s252, 3
      %s255 = sld [smem:[#allocation5 + %s254]]
      %s256 = sshrl.u32 %s255, 2
      %s257 = sand.u32 %s255, 3
      %s258 = smul.u32 %s256, 8
      %s259 = sadd.s32 %s257, %s258
      %s260 = smul.u32 %s254, 8
      %s261 = sadd.s32 %s259, %s260
      %s262 = smul.addr %s261, 16
      %s263 = scalar_lea.hbm %s1, %s262
      %s264 = sadd.s32 5, %s159
      %s265 = scalar_lea.vmem [#allocation2], %s264
      %s266 = sadd.s32 5, %s161
      %s267 = scalar_lea.sflag [#allocation3], %s266
      %s269 = sshll.u32 %s265, 4
      %s270 = int_to_ptr.vmem [resolvable:$true] %s269
      %272 = dma.hbm_to_vmem [thread:$0]  %s263, 32, %s270, %s267, 64, 128, 1
      %s273 = sadd.s32 %s147, 6
      %p274 = scmp.lt.s32.totalorder %s273, 3
      %s275 = scalar_select %p274, %s273, 3
      %s276 = sld [smem:[#allocation5 + %s275]]
      %s277 = sshrl.u32 %s276, 2
      %s278 = sand.u32 %s276, 3
      %s279 = smul.u32 %s277, 8
      %s280 = sadd.s32 %s278, %s279
      %s281 = smul.u32 %s275, 8
      %s282 = sadd.s32 %s280, %s281
      %s283 = smul.addr %s282, 16
      %s284 = scalar_lea.hbm %s1, %s283
      %s285 = sadd.s32 6, %s159
      %s286 = scalar_lea.vmem [#allocation2], %s285
      %s287 = sadd.s32 6, %s161
      %s288 = scalar_lea.sflag [#allocation3], %s287
      %s290 = sshll.u32 %s286, 4
      %s291 = int_to_ptr.vmem [resolvable:$true] %s290
      %293 = dma.hbm_to_vmem [thread:$0]  %s284, 32, %s291, %s288, 64, 128, 1
      %s294 = sadd.s32 %s147, 7
      %p295 = scmp.lt.s32.totalorder %s294, 3
      %s296 = scalar_select %p295, %s294, 3
      %s297 = sld [smem:[#allocation5 + %s296]]
      %s298 = sshrl.u32 %s297, 2
      %s299 = sand.u32 %s297, 3
      %s300 = smul.u32 %s298, 8
      %s301 = sadd.s32 %s299, %s300
      %s302 = smul.u32 %s296, 8
      %s303 = sadd.s32 %s301, %s302
      %s304 = smul.addr %s303, 16
      %s305 = scalar_lea.hbm %s1, %s304
      %s306 = sadd.s32 7, %s159
      %s307 = scalar_lea.vmem [#allocation2], %s306
      %s308 = sadd.s32 7, %s161
      %s309 = scalar_lea.sflag [#allocation3], %s308
      %s311 = sshll.u32 %s307, 4
      %s312 = int_to_ptr.vmem [resolvable:$true] %s311
      %314 = dma.hbm_to_vmem [thread:$0]  %s305, 32, %s312, %s309, 64, 128, 1
    $region9: #{tpu_custom_call.1} parent=1 // pred_fallthru
      _
    %s315 = smul.u32 %s19, 8
    %s316 = scalar_lea.sflag [#allocation3], %s315
    %s317 = smul.u32 1, 2
    %s318 = sshll.u32 %s317, 4
    %319 = dma.done %s316, %s318
    %s320 = sadd.s32 1, %s315
    %s321 = scalar_lea.sflag [#allocation3], %s320
    %s322 = sshll.u32 %s317, 4
    %323 = dma.done %s321, %s322
    %s324 = sadd.s32 2, %s315
    %s325 = scalar_lea.sflag [#allocation3], %s324
    %s326 = sshll.u32 %s317, 4
    %327 = dma.done %s325, %s326
    %s328 = sadd.s32 3, %s315
    %s329 = scalar_lea.sflag [#allocation3], %s328
    %s330 = sshll.u32 %s317, 4
    %331 = dma.done %s329, %s330
    %s332 = sadd.s32 4, %s315
    %s333 = scalar_lea.sflag [#allocation3], %s332
    %s334 = sshll.u32 %s317, 4
    %335 = dma.done %s333, %s334
    %s336 = sadd.s32 5, %s315
    %s337 = scalar_lea.sflag [#allocation3], %s336
    %s338 = sshll.u32 %s317, 4
    %339 = dma.done %s337, %s338
    %s340 = sadd.s32 6, %s315
    %s341 = scalar_lea.sflag [#allocation3], %s340
    %s342 = sshll.u32 %s317, 4
    %343 = dma.done %s341, %s342
    %s344 = sadd.s32 7, %s315
    %s345 = scalar_lea.sflag [#allocation3], %s344
    %s346 = sshll.u32 %s317, 4
    %347 = dma.done %s345, %s346
    %s348 = smul.u32 %s19, 2
    %s349 = smul.addr %s348, 8
    %s350 = scalar_lea.vmem [#allocation2], %s349
    %v351 = vld [vmem:[%s350] sm:$0xff]
    %v352 = vld [vmem:[%s350 + $0x8] sm:$0xff]
    %v353 = vsub.f32 0.0, %v351
    %v354 = vsub.f32 0.0, %v352
    %v355 = vmul.f32 %v353, 1.442695
    %v356 = vpow.pop %v355
    %v357 = vmul.f32 %v354, 1.442695
    %v358 = vpow.pop %v357
    %v359 = vadd.f32 %v356, 1.0
    %v360 = vadd.f32 %v358, 1.0
    %v361 = vrcp.pop %v359
    %v362 = vmul.f32 1.0, %v361
    %v363 = vrcp.pop %v360
    %v364 = vmul.f32 1.0, %v363
    %365 = vst [vmem:[#allocation6] sm:$0xff] %v362
    %366 = vst [vmem:[#allocation6 + $0x8] sm:$0xff] %v364
    // Predicated region
    $region10: #{tpu_custom_call.1} parent=1 // pred_check
      _
    $region11: #{tpu_custom_call.1} parent=1 // pred_check_branch
      %368 = sbr.rel (0) target = $region13
    $region12: #{tpu_custom_call.1} parent=1 // pred_region
      %s370 = ssub.s32 256, 256
      %371 = vsyncadd [#allocation7], %s370
      %s373 = sshll.u32 [#allocation6], 4
      %s374 = int_to_ptr.vmem [resolvable:$true] %s373
      %376 = dma.vmem_to_hbm [thread:$0]  %s374, 256, %s2, [#allocation7]
    $region13: #{tpu_custom_call.1} parent=1 // pred_fallthru
      _
    // Predicated region
    $region14: #{tpu_custom_call.1} parent=1 // pred_check
      _
    $region15: #{tpu_custom_call.1} parent=1 // pred_check_branch
      %378 = sbr.rel (0) target = $region17
    $region16: #{tpu_custom_call.1} parent=1 // pred_region
      %379 = dma.done [#allocation7], 256
    $region17: #{tpu_custom_call.1} parent=1 // pred_fallthru
      _
    %380 = vsyncpa [#allocation7], 1
  %381 = vsyncmov [#allocation3]
  %s382 = vpop.sfrf %381
  %p383 = scmp.eq.s32.totalorder %s382, 0
  %p384 = pneg %p383
  %386 = shalt.err (%p384)
  %s387 = scalar_lea.sflag [#allocation3], 1
  %388 = vsyncmov %s387
  %s389 = vpop.sfrf %388
  %p390 = scmp.eq.s32.totalorder %s389, 0
  %p391 = pneg %p390
  %393 = shalt.err (%p391)
  %s394 = scalar_lea.sflag [#allocation3], 2
  %395 = vsyncmov %s394
  %s396 = vpop.sfrf %395
  %p397 = scmp.eq.s32.totalorder %s396, 0
  %p398 = pneg %p397
  %400 = shalt.err (%p398)
  %s401 = scalar_lea.sflag [#allocation3], 3
  %402 = vsyncmov %s401
  %s403 = vpop.sfrf %402
  %p404 = scmp.eq.s32.totalorder %s403, 0
  %p405 = pneg %p404
  %407 = shalt.err (%p405)
  %s408 = scalar_lea.sflag [#allocation3], 4
  %409 = vsyncmov %s408
  %s410 = vpop.sfrf %409
  %p411 = scmp.eq.s32.totalorder %s410, 0
  %p412 = pneg %p411
  %414 = shalt.err (%p412)
  %s415 = scalar_lea.sflag [#allocation3], 5
  %416 = vsyncmov %s415
  %s417 = vpop.sfrf %416
  %p418 = scmp.eq.s32.totalorder %s417, 0
  %p419 = pneg %p418
  %421 = shalt.err (%p419)
  %s422 = scalar_lea.sflag [#allocation3], 6
  %423 = vsyncmov %s422
  %s424 = vpop.sfrf %423
  %p425 = scmp.eq.s32.totalorder %s424, 0
  %p426 = pneg %p425
  %428 = shalt.err (%p426)
  %s429 = scalar_lea.sflag [#allocation3], 7
  %430 = vsyncmov %s429
  %s431 = vpop.sfrf %430
  %p432 = scmp.eq.s32.totalorder %s431, 0
  %p433 = pneg %p432
  %435 = shalt.err (%p433)
  %s436 = scalar_lea.sflag [#allocation3], 8
  %437 = vsyncmov %s436
  %s438 = vpop.sfrf %437
  %p439 = scmp.eq.s32.totalorder %s438, 0
  %p440 = pneg %p439
  %442 = shalt.err (%p440)
  %s443 = scalar_lea.sflag [#allocation3], 9
  %444 = vsyncmov %s443
  %s445 = vpop.sfrf %444
  %p446 = scmp.eq.s32.totalorder %s445, 0
  %p447 = pneg %p446
  %449 = shalt.err (%p447)
  %s450 = scalar_lea.sflag [#allocation3], 10
  %451 = vsyncmov %s450
  %s452 = vpop.sfrf %451
  %p453 = scmp.eq.s32.totalorder %s452, 0
  %p454 = pneg %p453
  %456 = shalt.err (%p454)
  %s457 = scalar_lea.sflag [#allocation3], 11
  %458 = vsyncmov %s457
  %s459 = vpop.sfrf %458
  %p460 = scmp.eq.s32.totalorder %s459, 0
  %p461 = pneg %p460
  %463 = shalt.err (%p461)
  %s464 = scalar_lea.sflag [#allocation3], 12
  %465 = vsyncmov %s464
  %s466 = vpop.sfrf %465
  %p467 = scmp.eq.s32.totalorder %s466, 0
  %p468 = pneg %p467
  %470 = shalt.err (%p468)
  %s471 = scalar_lea.sflag [#allocation3], 13
  %472 = vsyncmov %s471
  %s473 = vpop.sfrf %472
  %p474 = scmp.eq.s32.totalorder %s473, 0
  %p475 = pneg %p474
  %477 = shalt.err (%p475)
  %s478 = scalar_lea.sflag [#allocation3], 14
  %479 = vsyncmov %s478
  %s480 = vpop.sfrf %479
  %p481 = scmp.eq.s32.totalorder %s480, 0
  %p482 = pneg %p481
  %484 = shalt.err (%p482)
  %s485 = scalar_lea.sflag [#allocation3], 15
  %486 = vsyncmov %s485
  %s487 = vpop.sfrf %486
  %p488 = scmp.eq.s32.totalorder %s487, 0
  %p489 = pneg %p488
  %491 = shalt.err (%p489)

</llo_original>
